<compile_context>
chip_gen: v7x
topology: tpu7x:2x2x1
jax: 0.10.0
libtpu: 0.0.40
codegen_flags: <defaults>
</compile_context>

<pallas_src>
import functools

import jax
import jax.numpy as jnp
from jax.experimental import pallas as pl
from jax.experimental.pallas import tpu as pltpu

EPS = 1e-5  # nn.InstanceNorm2d default


# ----------------------------- in-kernel helpers -----------------------------

def _instance_norm(x, hw):
    """InstanceNorm2d(affine=False): per-row (= per (b, c) instance) stats over
    the lane axis, single pass (independent reductions)."""
    inv_n = 1.0 / hw
    s = jnp.sum(x, axis=1, keepdims=True)
    s2 = jnp.sum(x * x, axis=1, keepdims=True)
    mean = s * inv_n
    var = jnp.maximum(s2 * inv_n - mean * mean, 0.0)
    return (x - mean) * jax.lax.rsqrt(var + EPS)


def _conv3x3_reflect(x, wmat, bias, masks, width, hw):
    """3x3 'same' conv with reflect padding on the packed (B*C, HW) layout.

    x:    (BC, HW)   with the flattened spatial dim on lanes.
    wmat: (BC, 9*BC) block-diagonal-over-batch weight, column t*BC + b*C + ci
          (t = kh*3 + kw) holding w[co, ci, kh, kw] for output row b*C + co.
    bias: (BC, 1).

    The 9 reflect-shifted taps are built with lane rolls + border masks
    (wrapped values always land on masked border positions, so the circular
    wrap never leaks), stacked into a (9*BC, HW) im2col slab, and reduced with
    a single MXU matmul.
    """
    w_first, w_last, h_first, h_last = masks

    x_prev = pltpu.roll(x, 1, axis=1)        # value from flat position p-1
    x_next = pltpu.roll(x, hw - 1, axis=1)   # value from flat position p+1
    col = {
        -1: jnp.where(w_first, x_next, x_prev),   # column w-1 (reflect at w=0)
        0: x,
        +1: jnp.where(w_last, x_prev, x_next),    # column w+1 (reflect at w=W-1)
    }

    rows = {}
    for dx, cx in col.items():
        up = pltpu.roll(cx, width, axis=1)          # value from row h-1
        down = pltpu.roll(cx, hw - width, axis=1)   # value from row h+1
        rows[(-1, dx)] = jnp.where(h_first, down, up)   # row h-1 (reflect at h=0)
        rows[(0, dx)] = cx
        rows[(+1, dx)] = jnp.where(h_last, up, down)    # row h+1 (reflect at h=H-1)

    # im2col slab, tap-major order t = kh*3 + kw (matches the weight packing).
    xcat = jnp.concatenate(
        [rows[(dy, dx)] for dy in (-1, 0, 1) for dx in (-1, 0, 1)], axis=0)

    # Single MXU matmul: (BC, 9*BC) x (9*BC, HW) -> (BC, HW).
    y = jnp.dot(wmat, xcat, preferred_element_type=jnp.float32)
    return y + bias


# --------------------------------- kernel ------------------------------------

def resnet_predict_kernel(t0_ref, t1_ref, wa_ref, ba_ref, wb_ref, bb_ref,
                          out_ref, *, H, W):
    HW = H * W
    BC = t0_ref.shape[0]

    # Border masks for the reflect conv, built once at full (BC, HW) shape so
    # every jnp.where is purely elementwise (no per-tap re-broadcast).
    pos = jax.lax.broadcasted_iota(jnp.int32, (BC, HW), 1)
    colw = pos % W
    masks = (colw == 0,                 # w_first
             colw == (W - 1),           # w_last
             pos < W,                   # h_first
             pos >= (H - 1) * W)        # h_last

    t0 = t0_ref[...]
    t1 = t1_ref[...]

    # conv_block_a(t_0) + t_1
    out1 = _conv3x3_reflect(t0, wa_ref[...], ba_ref[...], masks, W, HW) + t1

    # conv_block_b(out1) = IN -> ReLU -> reflect-pad -> Conv3x3 -> IN
    h = jnp.maximum(_instance_norm(out1, HW), 0.0)
    h = _instance_norm(
        _conv3x3_reflect(h, wb_ref[...], bb_ref[...], masks, W, HW), HW)

    out_ref[...] = (out1 + h).astype(out_ref.dtype)


# --------------------------------- wrapper ------------------------------------

def _pack_conv_weight(w, B):
    """OIHW (C, C, 3, 3) -> (B*C, 9*B*C) block-diagonal-over-batch matrix.

    Column index t*BC + b*C + ci (t = kh*3 + kw) holds w[co, ci, kh, kw] for
    output row b*C + co, and 0 for mismatched batch blocks.
    """
    C = w.shape[0]
    BC = B * C
    wt = jnp.transpose(w, (2, 3, 0, 1)).reshape(9, C, C)        # (tap, co, ci)
    eye = jnp.eye(B, dtype=w.dtype)
    wbd = jnp.einsum("tij,ab->taibj", wt, eye).reshape(9, BC, BC)
    return jnp.transpose(wbd, (1, 0, 2)).reshape(BC, 9 * BC)


def resnet_predict_block(t0, t1, wa, ba, wb, bb):
    """t0, t1: (B, C, H, W) NCHW.  wa, wb: (C, C, 3, 3) OIHW.  ba, bb: (C,)."""
    B, C, H, W = t0.shape
    HW = H * W
    BC = B * C

    # Pack batch onto sublanes, spatial onto lanes (lane-dense in and out).
    t0f = t0.reshape(BC, HW).astype(jnp.float32)
    t1f = t1.reshape(BC, HW).astype(jnp.float32)
    wam = _pack_conv_weight(wa.astype(jnp.float32), B)
    wbm = _pack_conv_weight(wb.astype(jnp.float32), B)
    bam = jnp.tile(ba.astype(jnp.float32), B).reshape(BC, 1)
    bbm = jnp.tile(bb.astype(jnp.float32), B).reshape(BC, 1)

    img_spec = pl.BlockSpec((BC, HW), lambda i: (0, 0))
    w_spec = pl.BlockSpec((BC, 9 * BC), lambda i: (0, 0))
    b_spec = pl.BlockSpec((BC, 1), lambda i: (0, 0))

    kernel = functools.partial(resnet_predict_kernel, H=H, W=W)
    out = pl.pallas_call(
        kernel,
        out_shape=jax.ShapeDtypeStruct((BC, HW), jnp.float32),
        grid=(1,),
        in_specs=[img_spec, img_spec, w_spec, b_spec, w_spec, b_spec],
        out_specs=img_spec,
        compiler_params=pltpu.CompilerParams(
            dimension_semantics=("arbitrary",)),
    )(t0f, t1f, wam, bam, wbm, bbm)
    return out.reshape(B, C, H, W)


# ----------------------------- pure-JAX reference -----------------------------

def _conv3x3_reflect_ref(x, w, b):
    xp = jnp.pad(x, ((0, 0), (0, 0), (1, 1), (1, 1)), mode="reflect")
    y = jax.lax.conv_general_dilated(
        xp, w, window_strides=(1, 1), padding="VALID",
        dimension_numbers=("NCHW", "OIHW", "NCHW"))
    return y + b.reshape(1, -1, 1, 1)


def _instance_norm_ref(x):
    mean = jnp.mean(x, axis=(2, 3), keepdims=True)
    var = jnp.mean(jnp.square(x - mean), axis=(2, 3), keepdims=True)
    return (x - mean) * jax.lax.rsqrt(var + EPS)


def resnet_predict_block_ref(t0, t1, wa, ba, wb, bb):
    out1 = _conv3x3_reflect_ref(t0, wa, ba) + t1
    h = jnp.maximum(_instance_norm_ref(out1), 0.0)
    h = _instance_norm_ref(_conv3x3_reflect_ref(h, wb, bb))
    return out1 + h


# ----------------------------------- main -------------------------------------

if __name__ == "__main__":
    B, C, H, W = 2, 4, 16, 16   # dim = 4
    key = jax.random.PRNGKey(0)
    k0, k1, k2, k3, k4, k5 = jax.random.split(key, 6)

    t0 = jax.random.normal(k0, (B, C, H, W), jnp.float32)
    t1 = jax.random.normal(k1, (B, C, H, W), jnp.float32)
    wa = jax.random.normal(k2, (C, C, 3, 3), jnp.float32) * 0.1
    ba = jax.random.normal(k3, (C,), jnp.float32) * 0.1
    wb = jax.random.normal(k4, (C, C, 3, 3), jnp.float32) * 0.1
    bb = jax.random.normal(k5, (C,), jnp.float32) * 0.1

    out = jax.block_until_ready(resnet_predict_block(t0, t1, wa, ba, wb, bb))
    ref = resnet_predict_block_ref(t0, t1, wa, ba, wb, bb)

    assert out.shape == (B, C, H, W)
    assert jnp.allclose(out, ref, rtol=1e-3, atol=1e-3), "mismatch vs pure-JAX reference"

    print("KERNEL_OK")
</pallas_src>

<mosaic_0001>
module attributes {stable_mosaic.version = 11 : i64} {
  func.func @resnet_predict_kernel(%arg0: i32, %arg1: memref<8x256xf32, #tpu.memory_space<vmem>>, %arg2: memref<8x256xf32, #tpu.memory_space<vmem>>, %arg3: memref<8x72xf32, #tpu.memory_space<vmem>>, %arg4: memref<8x1xf32, #tpu.memory_space<vmem>>, %arg5: memref<8x72xf32, #tpu.memory_space<vmem>>, %arg6: memref<8x1xf32, #tpu.memory_space<vmem>>, %arg7: memref<8x256xf32, #tpu.memory_space<vmem>>) attributes {dimension_semantics = [#tpu.dimension_semantics<arbitrary>], iteration_bounds = array<i64: 1>, scalar_prefetch = 0 : i64, scratch_operands = 0 : i64, tpu.core_type = #tpu.core_type<tc>, window_params = [{pipeline_mode = #tpu.pipeline_mode<synchronous>, transform_indices = @transform_0, window_bounds = array<i64: 8, 256>}, {pipeline_mode = #tpu.pipeline_mode<synchronous>, transform_indices = @transform_1, window_bounds = array<i64: 8, 256>}, {pipeline_mode = #tpu.pipeline_mode<synchronous>, transform_indices = @transform_2, window_bounds = array<i64: 8, 72>}, {pipeline_mode = #tpu.pipeline_mode<synchronous>, transform_indices = @transform_3, window_bounds = array<i64: 8, 1>}, {pipeline_mode = #tpu.pipeline_mode<synchronous>, transform_indices = @transform_4, window_bounds = array<i64: 8, 72>}, {pipeline_mode = #tpu.pipeline_mode<synchronous>, transform_indices = @transform_5, window_bounds = array<i64: 8, 1>}, {pipeline_mode = #tpu.pipeline_mode<synchronous>, transform_indices = @transform_6, window_bounds = array<i64: 8, 256>}]} {
    %0 = tpu.iota {dimensions = array<i32: 1>} : vector<8x256xi32>
    %c16_i32 = arith.constant 16 : i32
    %c0_i32 = arith.constant 0 : i32
    %1 = arith.cmpi eq, %c16_i32, %c0_i32 : i32
    %c1_i32 = arith.constant 1 : i32
    %2 = arith.select %1, %c1_i32, %c16_i32 : i32
    %3 = vector.broadcast %2 : i32 to vector<8x256xi32>
    %4 = arith.remsi %0, %3 : vector<8x256xi32>
    %c0_i32_0 = arith.constant 0 : i32
    %5 = vector.broadcast %c0_i32_0 : i32 to vector<8x256xi32>
    %6 = arith.cmpi ne, %4, %5 : vector<8x256xi32>
    %c0_i32_1 = arith.constant 0 : i32
    %7 = vector.broadcast %c0_i32_1 : i32 to vector<8x256xi32>
    %8 = arith.cmpi slt, %4, %7 : vector<8x256xi32>
    %c0_i32_2 = arith.constant 0 : i32
    %9 = arith.cmpi slt, %2, %c0_i32_2 : i32
    %10 = vector.broadcast %9 : i1 to vector<8x256xi1>
    %11 = vector.broadcast %10 : vector<8x256xi1> to vector<8x256xi1>
    %12 = arith.xori %8, %11 : vector<8x256xi1>
    %13 = arith.andi %12, %6 : vector<8x256xi1>
    %14 = vector.broadcast %2 : i32 to vector<8x256xi32>
    %15 = arith.addi %4, %14 : vector<8x256xi32>
    %16 = arith.select %13, %15, %4 : vector<8x256xi1>, vector<8x256xi32>
    %c0_i32_3 = arith.constant 0 : i32
    %17 = vector.broadcast %c0_i32_3 : i32 to vector<8x256xi32>
    %18 = arith.cmpi eq, %16, %17 : vector<8x256xi32>
    %c15_i32 = arith.constant 15 : i32
    %19 = vector.broadcast %c15_i32 : i32 to vector<8x256xi32>
    %20 = arith.cmpi eq, %16, %19 : vector<8x256xi32>
    %c16_i32_4 = arith.constant 16 : i32
    %21 = vector.broadcast %c16_i32_4 : i32 to vector<8x256xi32>
    %22 = arith.cmpi slt, %0, %21 : vector<8x256xi32>
    %c240_i32 = arith.constant 240 : i32
    %23 = vector.broadcast %c240_i32 : i32 to vector<8x256xi32>
    %24 = arith.cmpi sge, %0, %23 : vector<8x256xi32>
    %c0 = arith.constant 0 : index
    %c0_5 = arith.constant 0 : index
    %25 = vector.load %arg1[%c0, %c0_5] : memref<8x256xf32, #tpu.memory_space<vmem>>, vector<8x256xf32>
    %c0_6 = arith.constant 0 : index
    %c0_7 = arith.constant 0 : index
    %26 = vector.load %arg2[%c0_6, %c0_7] : memref<8x256xf32, #tpu.memory_space<vmem>>, vector<8x256xf32>
    %c0_8 = arith.constant 0 : index
    %c0_9 = arith.constant 0 : index
    %27 = vector.load %arg3[%c0_8, %c0_9] : memref<8x72xf32, #tpu.memory_space<vmem>>, vector<8x72xf32>
    %c0_10 = arith.constant 0 : index
    %c0_11 = arith.constant 0 : index
    %28 = vector.load %arg4[%c0_10, %c0_11] : memref<8x1xf32, #tpu.memory_space<vmem>>, vector<8x1xf32>
    %c1_i32_12 = arith.constant 1 : i32
    %29 = tpu.dynamic_rotate %25 by %c1_i32_12 dim 1 : vector<8x256xf32>, i32 -> vector<8x256xf32>
    %c255_i32 = arith.constant 255 : i32
    %30 = tpu.dynamic_rotate %25 by %c255_i32 dim 1 : vector<8x256xf32>, i32 -> vector<8x256xf32>
    %31 = arith.select %18, %30, %29 : vector<8x256xi1>, vector<8x256xf32>
    %32 = arith.select %20, %29, %30 : vector<8x256xi1>, vector<8x256xf32>
    %c16_i32_13 = arith.constant 16 : i32
    %33 = tpu.dynamic_rotate %31 by %c16_i32_13 dim 1 : vector<8x256xf32>, i32 -> vector<8x256xf32>
    %c240_i32_14 = arith.constant 240 : i32
    %34 = tpu.dynamic_rotate %31 by %c240_i32_14 dim 1 : vector<8x256xf32>, i32 -> vector<8x256xf32>
    %35 = arith.select %22, %34, %33 : vector<8x256xi1>, vector<8x256xf32>
    %36 = arith.select %24, %33, %34 : vector<8x256xi1>, vector<8x256xf32>
    %c16_i32_15 = arith.constant 16 : i32
    %37 = tpu.dynamic_rotate %25 by %c16_i32_15 dim 1 : vector<8x256xf32>, i32 -> vector<8x256xf32>
    %c240_i32_16 = arith.constant 240 : i32
    %38 = tpu.dynamic_rotate %25 by %c240_i32_16 dim 1 : vector<8x256xf32>, i32 -> vector<8x256xf32>
    %39 = arith.select %22, %38, %37 : vector<8x256xi1>, vector<8x256xf32>
    %40 = arith.select %24, %37, %38 : vector<8x256xi1>, vector<8x256xf32>
    %c16_i32_17 = arith.constant 16 : i32
    %41 = tpu.dynamic_rotate %32 by %c16_i32_17 dim 1 : vector<8x256xf32>, i32 -> vector<8x256xf32>
    %c240_i32_18 = arith.constant 240 : i32
    %42 = tpu.dynamic_rotate %32 by %c240_i32_18 dim 1 : vector<8x256xf32>, i32 -> vector<8x256xf32>
    %43 = arith.select %22, %42, %41 : vector<8x256xi1>, vector<8x256xf32>
    %44 = arith.select %24, %41, %42 : vector<8x256xi1>, vector<8x256xf32>
    %45 = tpu.concatenate %35, %39, %43, %31, %25, %32, %36, %40, %44 in 0 : vector<8x256xf32>, vector<8x256xf32>, vector<8x256xf32>, vector<8x256xf32>, vector<8x256xf32>, vector<8x256xf32>, vector<8x256xf32>, vector<8x256xf32>, vector<8x256xf32> -> vector<72x256xf32>
    %cst = arith.constant dense<0.000000e+00> : vector<8x256xf32>
    %46 = tpu.matmul %27, %45, %cst {dimension_numbers = #tpu.dot_dimension_numbers<[1], [0], [0], [1], [0, 0, 1, 1], [], []>} : vector<8x72xf32>, vector<72x256xf32>, vector<8x256xf32> -> vector<8x256xf32>
    %47 = vector.broadcast %28 : vector<8x1xf32> to vector<8x256xf32>
    %48 = arith.addf %46, %47 : vector<8x256xf32>
    %49 = arith.addf %48, %26 : vector<8x256xf32>
    %cst_19 = arith.constant dense<0.000000e+00> : vector<8xf32>
    %50 = vector.multi_reduction <add>, %49, %cst_19 [1] : vector<8x256xf32> to vector<8xf32>
    %51 = vector.shape_cast %50 : vector<8xf32> to vector<8x1xf32>
    %52 = arith.mulf %49, %49 : vector<8x256xf32>
    %cst_20 = arith.constant dense<0.000000e+00> : vector<8xf32>
    %53 = vector.multi_reduction <add>, %52, %cst_20 [1] : vector<8x256xf32> to vector<8xf32>
    %54 = vector.shape_cast %53 : vector<8xf32> to vector<8x1xf32>
    %cst_21 = arith.constant 3.906250e-03 : f32
    %55 = vector.broadcast %cst_21 : f32 to vector<8x1xf32>
    %56 = arith.mulf %51, %55 : vector<8x1xf32>
    %cst_22 = arith.constant 3.906250e-03 : f32
    %57 = vector.broadcast %cst_22 : f32 to vector<8x1xf32>
    %58 = arith.mulf %54, %57 : vector<8x1xf32>
    %59 = arith.mulf %56, %56 : vector<8x1xf32>
    %60 = arith.subf %58, %59 : vector<8x1xf32>
    %cst_23 = arith.constant 0.000000e+00 : f32
    %61 = vector.broadcast %cst_23 : f32 to vector<8x1xf32>
    %62 = arith.maximumf %60, %61 : vector<8x1xf32>
    %63 = vector.broadcast %56 : vector<8x1xf32> to vector<8x256xf32>
    %64 = arith.subf %49, %63 : vector<8x256xf32>
    %cst_24 = arith.constant 9.99999974E-6 : f32
    %65 = vector.broadcast %cst_24 : f32 to vector<8x1xf32>
    %66 = arith.addf %62, %65 : vector<8x1xf32>
    %67 = math.rsqrt %66 : vector<8x1xf32>
    %68 = vector.broadcast %67 : vector<8x1xf32> to vector<8x256xf32>
    %69 = arith.mulf %64, %68 : vector<8x256xf32>
    %cst_25 = arith.constant 0.000000e+00 : f32
    %70 = vector.broadcast %cst_25 : f32 to vector<8x256xf32>
    %71 = arith.maximumf %69, %70 : vector<8x256xf32>
    %c0_26 = arith.constant 0 : index
    %c0_27 = arith.constant 0 : index
    %72 = vector.load %arg5[%c0_26, %c0_27] : memref<8x72xf32, #tpu.memory_space<vmem>>, vector<8x72xf32>
    %c0_28 = arith.constant 0 : index
    %c0_29 = arith.constant 0 : index
    %73 = vector.load %arg6[%c0_28, %c0_29] : memref<8x1xf32, #tpu.memory_space<vmem>>, vector<8x1xf32>
    %c1_i32_30 = arith.constant 1 : i32
    %74 = tpu.dynamic_rotate %71 by %c1_i32_30 dim 1 : vector<8x256xf32>, i32 -> vector<8x256xf32>
    %c255_i32_31 = arith.constant 255 : i32
    %75 = tpu.dynamic_rotate %71 by %c255_i32_31 dim 1 : vector<8x256xf32>, i32 -> vector<8x256xf32>
    %76 = arith.select %18, %75, %74 : vector<8x256xi1>, vector<8x256xf32>
    %77 = arith.select %20, %74, %75 : vector<8x256xi1>, vector<8x256xf32>
    %c16_i32_32 = arith.constant 16 : i32
    %78 = tpu.dynamic_rotate %76 by %c16_i32_32 dim 1 : vector<8x256xf32>, i32 -> vector<8x256xf32>
    %c240_i32_33 = arith.constant 240 : i32
    %79 = tpu.dynamic_rotate %76 by %c240_i32_33 dim 1 : vector<8x256xf32>, i32 -> vector<8x256xf32>
    %80 = arith.select %22, %79, %78 : vector<8x256xi1>, vector<8x256xf32>
    %81 = arith.select %24, %78, %79 : vector<8x256xi1>, vector<8x256xf32>
    %c16_i32_34 = arith.constant 16 : i32
    %82 = tpu.dynamic_rotate %71 by %c16_i32_34 dim 1 : vector<8x256xf32>, i32 -> vector<8x256xf32>
    %c240_i32_35 = arith.constant 240 : i32
    %83 = tpu.dynamic_rotate %71 by %c240_i32_35 dim 1 : vector<8x256xf32>, i32 -> vector<8x256xf32>
    %84 = arith.select %22, %83, %82 : vector<8x256xi1>, vector<8x256xf32>
    %85 = arith.select %24, %82, %83 : vector<8x256xi1>, vector<8x256xf32>
    %c16_i32_36 = arith.constant 16 : i32
    %86 = tpu.dynamic_rotate %77 by %c16_i32_36 dim 1 : vector<8x256xf32>, i32 -> vector<8x256xf32>
    %c240_i32_37 = arith.constant 240 : i32
    %87 = tpu.dynamic_rotate %77 by %c240_i32_37 dim 1 : vector<8x256xf32>, i32 -> vector<8x256xf32>
    %88 = arith.select %22, %87, %86 : vector<8x256xi1>, vector<8x256xf32>
    %89 = arith.select %24, %86, %87 : vector<8x256xi1>, vector<8x256xf32>
    %90 = tpu.concatenate %80, %84, %88, %76, %71, %77, %81, %85, %89 in 0 : vector<8x256xf32>, vector<8x256xf32>, vector<8x256xf32>, vector<8x256xf32>, vector<8x256xf32>, vector<8x256xf32>, vector<8x256xf32>, vector<8x256xf32>, vector<8x256xf32> -> vector<72x256xf32>
    %cst_38 = arith.constant dense<0.000000e+00> : vector<8x256xf32>
    %91 = tpu.matmul %72, %90, %cst_38 {dimension_numbers = #tpu.dot_dimension_numbers<[1], [0], [0], [1], [0, 0, 1, 1], [], []>} : vector<8x72xf32>, vector<72x256xf32>, vector<8x256xf32> -> vector<8x256xf32>
    %92 = vector.broadcast %73 : vector<8x1xf32> to vector<8x256xf32>
    %93 = arith.addf %91, %92 : vector<8x256xf32>
    %cst_39 = arith.constant dense<0.000000e+00> : vector<8xf32>
    %94 = vector.multi_reduction <add>, %93, %cst_39 [1] : vector<8x256xf32> to vector<8xf32>
    %95 = vector.shape_cast %94 : vector<8xf32> to vector<8x1xf32>
    %96 = arith.mulf %93, %93 : vector<8x256xf32>
    %cst_40 = arith.constant dense<0.000000e+00> : vector<8xf32>
    %97 = vector.multi_reduction <add>, %96, %cst_40 [1] : vector<8x256xf32> to vector<8xf32>
    %98 = vector.shape_cast %97 : vector<8xf32> to vector<8x1xf32>
    %cst_41 = arith.constant 3.906250e-03 : f32
    %99 = vector.broadcast %cst_41 : f32 to vector<8x1xf32>
    %100 = arith.mulf %95, %99 : vector<8x1xf32>
    %cst_42 = arith.constant 3.906250e-03 : f32
    %101 = vector.broadcast %cst_42 : f32 to vector<8x1xf32>
    %102 = arith.mulf %98, %101 : vector<8x1xf32>
    %103 = arith.mulf %100, %100 : vector<8x1xf32>
    %104 = arith.subf %102, %103 : vector<8x1xf32>
    %cst_43 = arith.constant 0.000000e+00 : f32
    %105 = vector.broadcast %cst_43 : f32 to vector<8x1xf32>
    %106 = arith.maximumf %104, %105 : vector<8x1xf32>
    %107 = vector.broadcast %100 : vector<8x1xf32> to vector<8x256xf32>
    %108 = arith.subf %93, %107 : vector<8x256xf32>
    %cst_44 = arith.constant 9.99999974E-6 : f32
    %109 = vector.broadcast %cst_44 : f32 to vector<8x1xf32>
    %110 = arith.addf %106, %109 : vector<8x1xf32>
    %111 = math.rsqrt %110 : vector<8x1xf32>
    %112 = vector.broadcast %111 : vector<8x1xf32> to vector<8x256xf32>
    %113 = arith.mulf %108, %112 : vector<8x256xf32>
    %114 = arith.addf %49, %113 : vector<8x256xf32>
    %c0_45 = arith.constant 0 : index
    %c0_46 = arith.constant 0 : index
    %115 = vector.load %arg7[%c0_45, %c0_46] : memref<8x256xf32, #tpu.memory_space<vmem>>, vector<8x256xf32>
    tpu.vector_store %arg7[%c0_45, %c0_46], %114 {strides = array<i32>} : memref<8x256xf32, #tpu.memory_space<vmem>>, vector<8x256xf32>,
    return
  }
  func.func @transform_0(%arg0: i32) -> (i32, i32) {
    %c0_i32 = arith.constant 0 : i32
    %c0_i32_0 = arith.constant 0 : i32
    %c0_i32_1 = arith.constant 0 : i32
    return %c0_i32, %c0_i32_0 : i32, i32
  }
  func.func @transform_1(%arg0: i32) -> (i32, i32) {
    %c0_i32 = arith.constant 0 : i32
    %c0_i32_0 = arith.constant 0 : i32
    %c0_i32_1 = arith.constant 0 : i32
    return %c0_i32, %c0_i32_0 : i32, i32
  }
  func.func @transform_2(%arg0: i32) -> (i32, i32) {
    %c0_i32 = arith.constant 0 : i32
    %c0_i32_0 = arith.constant 0 : i32
    %c0_i32_1 = arith.constant 0 : i32
    return %c0_i32, %c0_i32_0 : i32, i32
  }
  func.func @transform_3(%arg0: i32) -> (i32, i32) {
    %c0_i32 = arith.constant 0 : i32
    %c0_i32_0 = arith.constant 0 : i32
    %c0_i32_1 = arith.constant 0 : i32
    return %c0_i32, %c0_i32_0 : i32, i32
  }
  func.func @transform_4(%arg0: i32) -> (i32, i32) {
    %c0_i32 = arith.constant 0 : i32
    %c0_i32_0 = arith.constant 0 : i32
    %c0_i32_1 = arith.constant 0 : i32
    return %c0_i32, %c0_i32_0 : i32, i32
  }
  func.func @transform_5(%arg0: i32) -> (i32, i32) {
    %c0_i32 = arith.constant 0 : i32
    %c0_i32_0 = arith.constant 0 : i32
    %c0_i32_1 = arith.constant 0 : i32
    return %c0_i32, %c0_i32_0 : i32, i32
  }
  func.func @transform_6(%arg0: i32) -> (i32, i32) {
    %c0_i32 = arith.constant 0 : i32
    %c0_i32_0 = arith.constant 0 : i32
    %c0_i32_1 = arith.constant 0 : i32
    return %c0_i32, %c0_i32_0 : i32, i32
  }
}

</mosaic_0001>

<llo_original>
// kernel: tpu_custom_call.1
$region0: #{tpu_custom_call.1}
  #allocation0 [shape = 'u32[]', space=smem, size = 0x4, offset = 0x4, fixed_abs, tag = 'smem constant byte address 0x4 - core index']
  #allocation1 [shape = 'u32[144,128]{1,0:T(1,128)}', space=vmem, size = 0x12000, scoped, tag = 'internal scratch']
  %s0 = inlined_call_operand.vmem [shape: f32[8,256], index: 0, kind: input, shape index: {}]
  %s1 = inlined_call_operand.hbm [shape: f32[8,256], index: 1, kind: input, shape index: {}]
  %s2 = inlined_call_operand.vmem [shape: f32[8,72], index: 2, kind: input, shape index: {}]
  %s3 = inlined_call_operand.vmem [shape: f32[8,1], index: 3, kind: input, shape index: {}]
  %s4 = inlined_call_operand.vmem [shape: f32[8,72], index: 4, kind: input, shape index: {}]
  %s5 = inlined_call_operand.vmem [shape: f32[8,1], index: 5, kind: input, shape index: {}]
  %s6 = inlined_call_operand.hbm [shape: f32[8,256], index: 6, kind: output, shape index: {}]
  %s7 = sld [smem:[#allocation0]]
  $region38: #{tpu_custom_call.1} parent=0
    _
  %s9 = ssub.s32 1, %s7
  %s10 = scalar_select 0, %s9, %s7
  $region1: #{tpu_custom_call.1} parent=0
    #allocation2 [shape = 'u8[8192]{0}', space=vmem, size = 0x2000, scoped, tag = 'input window, operand 1, single buffered']
    #allocation3 [shape = 's32[1]{0}', space=sflag, size = 0x4, scoped, tag = 'scoped memory for tpu_custom_call.1']
    #allocation4 [shape = 's32[1]{0}', space=sflag, size = 0x4, scoped, tag = 'scoped memory for tpu_custom_call.1']
    #allocation5 [shape = 'u8[8192]{0}', space=vmem, size = 0x2000, scoped, tag = 'output window, operand 0, single buffered']
    %11 = vsyncpa [#allocation3], 0
    %12 = vsyncpa [#allocation4], 0
    // Predicated region
    $region2: #{tpu_custom_call.1} parent=1 // pred_check
      _
    $region3: #{tpu_custom_call.1} parent=1 // pred_check_branch
      %14 = sbr.rel (0) target = $region5
    $region4: #{tpu_custom_call.1} parent=1 // pred_region
      _
    $region5: #{tpu_custom_call.1} parent=1 // pred_fallthru
      _
    // Predicated region
    $region6: #{tpu_custom_call.1} parent=1 // pred_check
      _
    $region7: #{tpu_custom_call.1} parent=1 // pred_check_branch
      %16 = sbr.rel (0) target = $region9
    $region8: #{tpu_custom_call.1} parent=1 // pred_region
      %s18 = ssub.s32 256, 256
      %19 = vsyncadd [#allocation3], %s18
      %s21 = sshll.u32 [#allocation2], 4
      %s22 = int_to_ptr.vmem [resolvable:$true] %s21
      %24 = dma.hbm_to_vmem [thread:$0]  %s1, 256, %s22, [#allocation3]
    $region9: #{tpu_custom_call.1} parent=1 // pred_fallthru
      _
    // Predicated region
    $region10: #{tpu_custom_call.1} parent=1 // pred_check
      _
    $region11: #{tpu_custom_call.1} parent=1 // pred_check_branch
      %26 = sbr.rel (0) target = $region13
    $region12: #{tpu_custom_call.1} parent=1 // pred_region
      _
    $region13: #{tpu_custom_call.1} parent=1 // pred_fallthru
      _
    // Predicated region
    $region14: #{tpu_custom_call.1} parent=1 // pred_check
      _
    $region15: #{tpu_custom_call.1} parent=1 // pred_check_branch
      %28 = sbr.rel (0) target = $region17
    $region16: #{tpu_custom_call.1} parent=1 // pred_region
      _
    $region17: #{tpu_custom_call.1} parent=1 // pred_fallthru
      _
    // Predicated region
    $region18: #{tpu_custom_call.1} parent=1 // pred_check
      _
    $region19: #{tpu_custom_call.1} parent=1 // pred_check_branch
      %30 = sbr.rel (0) target = $region21
    $region20: #{tpu_custom_call.1} parent=1 // pred_region
      _
    $region21: #{tpu_custom_call.1} parent=1 // pred_fallthru
      _
    // Predicated region
    $region22: #{tpu_custom_call.1} parent=1 // pred_check
      _
    $region23: #{tpu_custom_call.1} parent=1 // pred_check_branch
      %32 = sbr.rel (0) target = $region25
    $region24: #{tpu_custom_call.1} parent=1 // pred_region
      _
    $region25: #{tpu_custom_call.1} parent=1 // pred_fallthru
      _
    // Predicated region
    $region26: #{tpu_custom_call.1} parent=1 // pred_check
      _
    $region27: #{tpu_custom_call.1} parent=1 // pred_check_branch
      %34 = sbr.rel (0) target = $region29
    $region28: #{tpu_custom_call.1} parent=1 // pred_region
      %35 = dma.done [#allocation3], 256
    $region29: #{tpu_custom_call.1} parent=1 // pred_fallthru
      _
    %v36 = vlaneseq
    %v37 = vand.u32 %v36, 127
    %v38 = vadd.s32 %v37, 128
    %vm39 = vcmp.lt.s32.totalorder %v37, 0
    %v40 = vsub.s32 0, %v37
    %v41 = vsel %vm39, %v40, %v37
    %v42 = vshrl.u32 %v41, 4
    %v43 = vand.u32 %v41, 15
    %v44 = vsub.s32 0, %v43
    %v45 = vsel %vm39, %v44, %v43
    %vm46 = vcmp.lt.s32.totalorder %v38, 0
    %v47 = vsub.s32 0, %v38
    %v48 = vsel %vm46, %v47, %v38
    %v49 = vshrl.u32 %v48, 4
    %v50 = vand.u32 %v48, 15
    %v51 = vsub.s32 0, %v50
    %v52 = vsel %vm46, %v51, %v50
    %vm53 = vcmp.ne.s32.totalorder %v45, 0
    %vm54 = vcmp.ne.s32.totalorder %v52, 0
    %vm55 = vcmp.lt.s32.totalorder %v45, 0
    %vm56 = vcmp.lt.s32.totalorder %v52, 0
    %vm57 = vmand %vm55, %vm53
    %vm58 = vmand %vm56, %vm54
    %v59 = vadd.s32 %v45, 16
    %v60 = vadd.s32 %v52, 16
    %v61 = vsel %vm57, %v59, %v45
    %v62 = vsel %vm58, %v60, %v52
    %vm63 = vcmp.eq.s32.totalorder %v61, 0
    %vm64 = vcmp.eq.s32.totalorder %v62, 0
    %vm65 = vcmp.eq.s32.totalorder %v61, 15
    %vm66 = vcmp.eq.s32.totalorder %v62, 15
    %vm67 = vcmp.lt.s32.totalorder %v37, 16
    %vm68 = vcmp.lt.s32.totalorder %v38, 16
    %vm69 = vcmp.ge.s32.totalorder %v37, 240
    %vm70 = vcmp.ge.s32.totalorder %v38, 240
    %v71 = vld [vmem:[%s0] sm:$0xff]
    %v72 = vld [vmem:[%s0 + $0x8] sm:$0xff]
    %v73 = vld [vmem:[#allocation2] sm:$0xff]
    %v74 = vld [vmem:[#allocation2 + $0x8] sm:$0xff]
    %v75 = vld [vmem:[%s2] sm:$0xff]
    %v76 = vld [vmem:[%s3] sm:$0xff]
    %77 = vrot.lane.b32.xlu0 %v71, 1
    %v78 = vpop.permute.xlu0 %77
    %79 = vrot.lane.b32.xlu0 %v72, 1
    %v80 = vpop.permute.xlu0 %79
    %vm81 = vcmp.lt.s32.totalorder %v37, 1
    %v82 = vsel %vm81, %v78, %v80
    %v83 = vsel %vm81, %v80, %v78
    %84 = vrot.lane.b32.xlu0 %v71, 127
    %v85 = vpop.permute.xlu0 %84
    %86 = vrot.lane.b32.xlu0 %v72, 127
    %v87 = vpop.permute.xlu0 %86
    %vm88 = vcmp.lt.s32.totalorder %v37, 127
    %v89 = vsel %vm88, %v85, %v87
    %v90 = vsel %vm88, %v87, %v85
    %v91 = vsel %vm63, %v89, %v83
    %v92 = vsel %vm64, %v90, %v82
    %v93 = vsel %vm65, %v83, %v89
    %v94 = vsel %vm66, %v82, %v90
    %95 = vrot.lane.b32.xlu0 %v91, 16
    %v96 = vpop.permute.xlu0 %95
    %97 = vrot.lane.b32.xlu0 %v92, 16
    %v98 = vpop.permute.xlu0 %97
    %v99 = vsel %vm67, %v96, %v98
    %v100 = vsel %vm67, %v98, %v96
    %101 = vrot.lane.b32.xlu0 %v91, 112
    %v102 = vpop.permute.xlu0 %101
    %103 = vrot.lane.b32.xlu0 %v92, 112
    %v104 = vpop.permute.xlu0 %103
    %vm105 = vcmp.lt.s32.totalorder %v37, 112
    %v106 = vsel %vm105, %v102, %v104
    %v107 = vsel %vm105, %v104, %v102
    %v108 = vsel %vm67, %v106, %v100
    %v109 = vsel %vm68, %v107, %v99
    %v110 = vsel %vm69, %v100, %v106
    %v111 = vsel %vm70, %v99, %v107
    %112 = vrot.lane.b32.xlu0 %v71, 16
    %v113 = vpop.permute.xlu0 %112
    %114 = vrot.lane.b32.xlu0 %v72, 16
    %v115 = vpop.permute.xlu0 %114
    %v116 = vsel %vm67, %v113, %v115
    %v117 = vsel %vm67, %v115, %v113
    %118 = vrot.lane.b32.xlu0 %v71, 112
    %v119 = vpop.permute.xlu0 %118
    %120 = vrot.lane.b32.xlu0 %v72, 112
    %v121 = vpop.permute.xlu0 %120
    %v122 = vsel %vm105, %v119, %v121
    %v123 = vsel %vm105, %v121, %v119
    %v124 = vsel %vm67, %v122, %v117
    %v125 = vsel %vm68, %v123, %v116
    %v126 = vsel %vm69, %v117, %v122
    %v127 = vsel %vm70, %v116, %v123
    %128 = vrot.lane.b32.xlu0 %v93, 16
    %v129 = vpop.permute.xlu0 %128
    %130 = vrot.lane.b32.xlu0 %v94, 16
    %v131 = vpop.permute.xlu0 %130
    %v132 = vsel %vm67, %v129, %v131
    %v133 = vsel %vm67, %v131, %v129
    %134 = vrot.lane.b32.xlu0 %v93, 112
    %v135 = vpop.permute.xlu0 %134
    %136 = vrot.lane.b32.xlu0 %v94, 112
    %v137 = vpop.permute.xlu0 %136
    %v138 = vsel %vm105, %v135, %v137
    %v139 = vsel %vm105, %v137, %v135
    %v140 = vsel %vm67, %v138, %v133
    %v141 = vsel %vm68, %v139, %v132
    %v142 = vsel %vm69, %v133, %v138
    %v143 = vsel %vm70, %v132, %v139
    %145 = vset.pattern.permute.xlu0 0
    %146 = vperm.xlu0 %145, %v76
    %v147 = vpop.permute.xlu0 %146
    %vm149 = vcmask 588800
    %v151 = vsel %vm149, %v75, 0
    %153 = vmatprep.subr.mxu0 %v109
    %154 = vmatpush1.msra.mxu0 %v108
    %155 = vmatprep.subr.mxu0 %v125
    %156 = vmatpush1.msra.mxu0 %v124
    %157 = vmatprep.subr.mxu0 %v141
    %158 = vmatpush1.msra.mxu0 %v140
    %159 = vmatprep.subr.mxu0 %v92
    %160 = vmatpush1.msra.mxu0 %v91
    %161 = vmatprep.subr.mxu0 %v72
    %162 = vmatpush1.msra.mxu0 %v71
    %163 = vmatprep.subr.mxu0 %v94
    %164 = vmatpush1.msra.mxu0 %v93
    %165 = vmatprep.subr.mxu0 %v111
    %166 = vmatpush1.msra.mxu0 %v110
    %167 = vmatprep.subr.mxu0 %v127
    %168 = vmatpush1.msra.mxu0 %v126
    %169 = vmatprep.subr.mxu0 %v143
    %170 = vmatpush1.msra.mxu0 %v142
    %171 = vmatprep.subr.mxu0 0.0
    %172 = vmatpush1.msra.mxu0 0.0
    %173 = vmatprep.subr.mxu0 0.0
    %174 = vmatpush1.msra.mxu0 0.0
    %175 = vmatprep.subr.mxu0 0.0
    %176 = vmatpush1.msra.mxu0 0.0
    %177 = vmatprep.subr.mxu0 0.0
    %178 = vmatpush1.msra.mxu0 0.0
    %179 = vmatprep.subr.mxu0 0.0
    %180 = vmatpush1.msra.mxu0 0.0
    %181 = vmatprep.subr.mxu0 0.0
    %182 = vmatpush1.msra.mxu0 0.0
    %183 = vmatprep.subr.mxu0 0.0
    %184 = vmatpush1.msra.mxu0 0.0
    %185 = vmatprep.subr.mxu0 0.0
    %186 = vmatpush1.msra.mxu0 0.0
    %187 = vmatprep.subr.mxu0 0.0
    %188 = vmatpush1.msra.mxu0 0.0
    %189 = vmatprep.subr.mxu0 0.0
    %190 = vmatpush1.msra.mxu0 0.0
    %191 = vmatprep.subr.mxu0 0.0
    %192 = vmatpush1.msra.mxu0 0.0
    %193 = vmatprep.subr.mxu0 0.0
    %194 = vmatpush1.msra.mxu0 0.0
    %195 = vmatprep.subr.mxu0 0.0
    %196 = vmatpush1.msra.mxu0 0.0
    %197 = vmatprep.subr.mxu0 0.0
    %198 = vmatpush1.msra.mxu0 0.0
    %199 = vmatprep.subr.mxu0 0.0
    %200 = vmatpush1.msra.mxu0 0.0
    %201 = vmatprep.subr.mxu0 0.0
    %202 = vmatpush1.msra.mxu0 0.0
    %203 = vmatprep.subr.mxu0 0.0
    %204 = vmatpush1.msra.mxu0 0.0
    %205 = vmatprep.subr.mxu0 0.0
    %206 = vmatpush1.msra.mxu0 0.0
    %207 = vmatprep.subr.mxu0 0.0
    %208 = vmatpush1.msra.mxu0 0.0
    %209 = vmatprep.subr.mxu0 0.0
    %210 = vmatpush1.msra.mxu0 0.0
    %211 = vmatprep.subr.mxu0 0.0
    %212 = vmatpush1.msra.mxu0 0.0
    %213 = vmatprep.subr.mxu0 0.0
    %214 = vmatpush1.msra.mxu0 0.0
    %215 = vmatprep.subr.mxu0 0.0
    %216 = vmatpush1.msra.mxu0 0.0
    %217 = vmatprep.mubr.f32.mxu0 0.0
    %218 = vmatmul.mubr.f32.gmra.mrb[0].mxu0 %v151
    %v219 = vpop.f32.mrb[0].mxu0
    %v220 = vadd.f32 %v147, %v219
    %v221 = vpop.f32.mrb[0].mxu0
    %v222 = vadd.f32 %v147, %v221
    %223 = vdwg.mxu0
    %v224 = vadd.f32 %v220, %v73
    %v225 = vadd.f32 %v222, %v74
    %v226 = vadd.f32 %v224, %v225
    %227 = vadd.xlane.f32.xlu0 %v226
    %v228 = vpop.xlane.xlu0 %227
    %v229 = vmul.f32 %v224, %v224
    %v230 = vmul.f32 %v225, %v225
    %v231 = vadd.f32 %v229, %v230
    %232 = vadd.xlane.f32.xlu0 %v231
    %v233 = vpop.xlane.xlu0 %232
    %v234 = vmul.f32 %v228, 0.00390625
    %v235 = vmul.f32 %v233, 0.00390625
    %v236 = vmul.f32 %v234, %v234
    %v237 = vsub.f32 %v235, %v236
    %v238 = vmax.f32 %v237, 0.0
    %v239 = vsub.f32 %v224, %v234
    %v240 = vsub.f32 %v225, %v234
    %v241 = vadd.f32 %v238, 1e-05
    %v242 = vrsqrt.pop %v241
    %v243 = vmul.f32 %v239, %v242
    %v244 = vmul.f32 %v240, %v242
    %v245 = vmax.f32 %v243, 0.0
    %v246 = vmax.f32 %v244, 0.0
    %v247 = vld [vmem:[%s4] sm:$0xff]
    %v248 = vld [vmem:[%s5] sm:$0xff]
    %249 = vrot.lane.b32.xlu0 %v245, 1
    %v250 = vpop.permute.xlu0 %249
    %251 = vrot.lane.b32.xlu0 %v246, 1
    %v252 = vpop.permute.xlu0 %251
    %v253 = vsel %vm81, %v250, %v252
    %v254 = vsel %vm81, %v252, %v250
    %255 = vrot.lane.b32.xlu0 %v245, 127
    %v256 = vpop.permute.xlu0 %255
    %257 = vrot.lane.b32.xlu0 %v246, 127
    %v258 = vpop.permute.xlu0 %257
    %v259 = vsel %vm88, %v256, %v258
    %v260 = vsel %vm88, %v258, %v256
    %v261 = vsel %vm63, %v259, %v254
    %v262 = vsel %vm64, %v260, %v253
    %v263 = vsel %vm65, %v254, %v259
    %v264 = vsel %vm66, %v253, %v260
    %265 = vrot.lane.b32.xlu0 %v261, 16
    %v266 = vpop.permute.xlu0 %265
    %267 = vrot.lane.b32.xlu0 %v262, 16
    %v268 = vpop.permute.xlu0 %267
    %v269 = vsel %vm67, %v266, %v268
    %v270 = vsel %vm67, %v268, %v266
    %271 = vrot.lane.b32.xlu0 %v261, 112
    %v272 = vpop.permute.xlu0 %271
    %273 = vrot.lane.b32.xlu0 %v262, 112
    %v274 = vpop.permute.xlu0 %273
    %v275 = vsel %vm105, %v272, %v274
    %v276 = vsel %vm105, %v274, %v272
    %v277 = vsel %vm67, %v275, %v270
    %v278 = vsel %vm68, %v276, %v269
    %v279 = vsel %vm69, %v270, %v275
    %v280 = vsel %vm70, %v269, %v276
    %281 = vrot.lane.b32.xlu0 %v245, 16
    %v282 = vpop.permute.xlu0 %281
    %283 = vrot.lane.b32.xlu0 %v246, 16
    %v284 = vpop.permute.xlu0 %283
    %v285 = vsel %vm67, %v282, %v284
    %v286 = vsel %vm67, %v284, %v282
    %287 = vrot.lane.b32.xlu0 %v245, 112
    %v288 = vpop.permute.xlu0 %287
    %289 = vrot.lane.b32.xlu0 %v246, 112
    %v290 = vpop.permute.xlu0 %289
    %v291 = vsel %vm105, %v288, %v290
    %v292 = vsel %vm105, %v290, %v288
    %v293 = vsel %vm67, %v291, %v286
    %v294 = vsel %vm68, %v292, %v285
    %v295 = vsel %vm69, %v286, %v291
    %v296 = vsel %vm70, %v285, %v292
    %297 = vrot.lane.b32.xlu0 %v263, 16
    %v298 = vpop.permute.xlu0 %297
    %299 = vrot.lane.b32.xlu0 %v264, 16
    %v300 = vpop.permute.xlu0 %299
    %v301 = vsel %vm67, %v298, %v300
    %v302 = vsel %vm67, %v300, %v298
    %303 = vrot.lane.b32.xlu0 %v263, 112
    %v304 = vpop.permute.xlu0 %303
    %305 = vrot.lane.b32.xlu0 %v264, 112
    %v306 = vpop.permute.xlu0 %305
    %v307 = vsel %vm105, %v304, %v306
    %v308 = vsel %vm105, %v306, %v304
    %v309 = vsel %vm67, %v307, %v302
    %v310 = vsel %vm68, %v308, %v301
    %v311 = vsel %vm69, %v302, %v307
    %v312 = vsel %vm70, %v301, %v308
    %314 = vset.pattern.permute.xlu0 0
    %315 = vperm.xlu0 %314, %v248
    %v316 = vpop.permute.xlu0 %315
    %v319 = vsel %vm149, %v247, 0
    %321 = vmatprep.subr.mxu0 %v278
    %322 = vmatpush1.msra.mxu0 %v277
    %323 = vmatprep.subr.mxu0 %v294
    %324 = vmatpush1.msra.mxu0 %v293
    %325 = vmatprep.subr.mxu0 %v310
    %326 = vmatpush1.msra.mxu0 %v309
    %327 = vmatprep.subr.mxu0 %v262
    %328 = vmatpush1.msra.mxu0 %v261
    %329 = vmatprep.subr.mxu0 %v246
    %330 = vmatpush1.msra.mxu0 %v245
    %331 = vmatprep.subr.mxu0 %v264
    %332 = vmatpush1.msra.mxu0 %v263
    %333 = vmatprep.subr.mxu0 %v280
    %334 = vmatpush1.msra.mxu0 %v279
    %335 = vmatprep.subr.mxu0 %v296
    %336 = vmatpush1.msra.mxu0 %v295
    %337 = vmatprep.subr.mxu0 %v312
    %338 = vmatpush1.msra.mxu0 %v311
    %339 = vmatprep.subr.mxu0 0.0
    %340 = vmatpush1.msra.mxu0 0.0
    %341 = vmatprep.subr.mxu0 0.0
    %342 = vmatpush1.msra.mxu0 0.0
    %343 = vmatprep.subr.mxu0 0.0
    %344 = vmatpush1.msra.mxu0 0.0
    %345 = vmatprep.subr.mxu0 0.0
    %346 = vmatpush1.msra.mxu0 0.0
    %347 = vmatprep.subr.mxu0 0.0
    %348 = vmatpush1.msra.mxu0 0.0
    %349 = vmatprep.subr.mxu0 0.0
    %350 = vmatpush1.msra.mxu0 0.0
    %351 = vmatprep.subr.mxu0 0.0
    %352 = vmatpush1.msra.mxu0 0.0
    %353 = vmatprep.subr.mxu0 0.0
    %354 = vmatpush1.msra.mxu0 0.0
    %355 = vmatprep.subr.mxu0 0.0
    %356 = vmatpush1.msra.mxu0 0.0
    %357 = vmatprep.subr.mxu0 0.0
    %358 = vmatpush1.msra.mxu0 0.0
    %359 = vmatprep.subr.mxu0 0.0
    %360 = vmatpush1.msra.mxu0 0.0
    %361 = vmatprep.subr.mxu0 0.0
    %362 = vmatpush1.msra.mxu0 0.0
    %363 = vmatprep.subr.mxu0 0.0
    %364 = vmatpush1.msra.mxu0 0.0
    %365 = vmatprep.subr.mxu0 0.0
    %366 = vmatpush1.msra.mxu0 0.0
    %367 = vmatprep.subr.mxu0 0.0
    %368 = vmatpush1.msra.mxu0 0.0
    %369 = vmatprep.subr.mxu0 0.0
    %370 = vmatpush1.msra.mxu0 0.0
    %371 = vmatprep.subr.mxu0 0.0
    %372 = vmatpush1.msra.mxu0 0.0
    %373 = vmatprep.subr.mxu0 0.0
    %374 = vmatpush1.msra.mxu0 0.0
    %375 = vmatprep.subr.mxu0 0.0
    %376 = vmatpush1.msra.mxu0 0.0
    %377 = vmatprep.subr.mxu0 0.0
    %378 = vmatpush1.msra.mxu0 0.0
    %379 = vmatprep.subr.mxu0 0.0
    %380 = vmatpush1.msra.mxu0 0.0
    %381 = vmatprep.subr.mxu0 0.0
    %382 = vmatpush1.msra.mxu0 0.0
    %383 = vmatprep.subr.mxu0 0.0
    %384 = vmatpush1.msra.mxu0 0.0
    %385 = vmatprep.mubr.f32.mxu0 0.0
    %386 = vmatmul.mubr.f32.gmra.mrb[0].mxu0 %v319
    %v387 = vpop.f32.mrb[0].mxu0
    %v388 = vadd.f32 %v316, %v387
    %v389 = vpop.f32.mrb[0].mxu0
    %v390 = vadd.f32 %v316, %v389
    %391 = vdwg.mxu0
    %v392 = vadd.f32 %v388, %v390
    %393 = vadd.xlane.f32.xlu0 %v392
    %v394 = vpop.xlane.xlu0 %393
    %v395 = vmul.f32 %v388, %v388
    %v396 = vmul.f32 %v390, %v390
    %v397 = vadd.f32 %v395, %v396
    %398 = vadd.xlane.f32.xlu0 %v397
    %v399 = vpop.xlane.xlu0 %398
    %v400 = vmul.f32 %v394, 0.00390625
    %v401 = vmul.f32 %v399, 0.00390625
    %v402 = vmul.f32 %v400, %v400
    %v403 = vsub.f32 %v401, %v402
    %v404 = vmax.f32 %v403, 0.0
    %v405 = vsub.f32 %v388, %v400
    %v406 = vsub.f32 %v390, %v400
    %v407 = vadd.f32 %v404, 1e-05
    %v408 = vrsqrt.pop %v407
    %v409 = vmul.f32 %v405, %v408
    %v410 = vmul.f32 %v406, %v408
    %v411 = vadd.f32 %v224, %v409
    %v412 = vadd.f32 %v225, %v410
    %413 = vst [vmem:[#allocation5] sm:$0xff] %v411
    %414 = vst [vmem:[#allocation5 + $0x8] sm:$0xff] %v412
    // Predicated region
    $region30: #{tpu_custom_call.1} parent=1 // pred_check
      _
    $region31: #{tpu_custom_call.1} parent=1 // pred_check_branch
      %416 = sbr.rel (0) target = $region33
    $region32: #{tpu_custom_call.1} parent=1 // pred_region
      %s418 = ssub.s32 256, 256
      %419 = vsyncadd [#allocation4], %s418
      %s421 = sshll.u32 [#allocation5], 4
      %s422 = int_to_ptr.vmem [resolvable:$true] %s421
      %424 = dma.vmem_to_hbm [thread:$0]  %s422, 256, %s6, [#allocation4]
    $region33: #{tpu_custom_call.1} parent=1 // pred_fallthru
      _
    // Predicated region
    $region34: #{tpu_custom_call.1} parent=1 // pred_check
      _
    $region35: #{tpu_custom_call.1} parent=1 // pred_check_branch
      %426 = sbr.rel (0) target = $region37
    $region36: #{tpu_custom_call.1} parent=1 // pred_region
      %427 = dma.done [#allocation4], 256
    $region37: #{tpu_custom_call.1} parent=1 // pred_fallthru
      _
    %428 = vsyncpa [#allocation3], 1
    %429 = vsyncpa [#allocation4], 1

</llo_original>
